<compile_context>
chip_gen: v5e
topology: v5e:2x2
jax: 0.10.0
libtpu: 0.0.40
codegen_flags: <defaults>
</compile_context>

<pallas_src>
import jax
import jax.numpy as jnp
from jax.experimental import pallas as pl
from jax.experimental.pallas import tpu as pltpu


def _multiply_kernel(x_ref, y_ref, w_ref, b_ref, o_ref):
    # Linear (MXU matmul + bias) fused with the elementwise multiply on one batch tile.
    lin = jnp.dot(y_ref[...], w_ref[...], preferred_element_type=jnp.float32)
    lin = lin + b_ref[...]
    o_ref[...] = (x_ref[...] * lin).astype(o_ref.dtype)


def _vmem_capacity_bytes():
    """Physical VMEM capacity of the attached TPU; conservative (v7x-sized) fallback."""
    try:
        return int(pltpu.get_tpu_info().vmem_capacity_bytes)
    except Exception:
        return 64 * 1024 * 1024


def _pick_tile(B, tm_max):
    """Batch-tile size: full batch for small B, else >=2 grid steps (v7x dual-TC), capped."""
    tm_max8 = max(8, (tm_max // 8) * 8)
    if B <= 256:
        # Small batch: one tile if it fits (block == full dim is always layout-legal),
        # otherwise an 8-aligned tile.
        return B if B <= tm_max else tm_max8
    # Mid/large batch: make sure grid >= 2 so the "parallel" axis can use both v7x TCs.
    half_rounded = ((-(-B // 2)) + 7) // 8 * 8
    return min(tm_max8, half_rounded)


def _make_call(B, tm, in_dim, vmem_limit_bytes, weight_pipeline_mode):
    grid = (pl.cdiv(B, tm),)
    wb_kwargs = (
        {"pipeline_mode": weight_pipeline_mode} if weight_pipeline_mode is not None else {}
    )
    cost = pl.CostEstimate(
        flops=2 * B * 784 * in_dim,
        bytes_accessed=4 * (B * 784 * 2 + B * in_dim + in_dim * 784 + 784),
        transcendentals=0,
    )
    return pl.pallas_call(
        _multiply_kernel,
        out_shape=jax.ShapeDtypeStruct((B, 784), jnp.float32),
        grid_spec=pltpu.PrefetchScalarGridSpec(
            num_scalar_prefetch=0,
            grid=grid,
            in_specs=[
                pl.BlockSpec((tm, 784), lambda i: (i, 0)),                   # x tile, streamed
                pl.BlockSpec((tm, in_dim), lambda i: (i, 0)),                # y tile, streamed
                pl.BlockSpec((in_dim, 784), lambda i: (0, 0), **wb_kwargs),  # W: VMEM-resident
                pl.BlockSpec((1, 784), lambda i: (0, 0), **wb_kwargs),       # b: VMEM-resident
            ],
            out_specs=pl.BlockSpec((tm, 784), lambda i: (i, 0)),
        ),
        compiler_params=pltpu.CompilerParams(
            # batch axis is embarrassingly parallel -> shards across v7x's two TensorCores
            dimension_semantics=("parallel",),
            vmem_limit_bytes=vmem_limit_bytes,
        ),
        cost_estimate=cost,
    )


def multiply_forward(x, y, w_t, b, *, tm_max=None):
    """x: (B,1,28,28) f32, y: (B, input_dim), w_t: (input_dim, output_dim), b: (1, output_dim)."""
    B = x.shape[0]
    x_flat = x.reshape(B, 784)  # glue reshape in plain JAX (matches x.view(-1, 784))
    in_dim = y.shape[1]
    out_dim = w_t.shape[1]
    assert out_dim == 784, "output_dim must be 784 for the elementwise multiply to broadcast"

    # Per-generation tiling / VMEM policy (budgeted against the 896-lane padded tile width).
    if tm_max is None:
        if _vmem_capacity_bytes() >= 100 * 1024 * 1024:   # v5e / v6e: 128 MiB physical VMEM
            tm_max, vmem_limit = 4096, 96 * 1024 * 1024   # ~63 MiB double-buffered working set
        else:                                             # v7x (64 MiB) or unknown
            tm_max, vmem_limit = 2048, 48 * 1024 * 1024   # ~32 MiB double-buffered working set
    else:
        vmem_limit = 48 * 1024 * 1024

    tm = _pick_tile(B, tm_max)

    args = (x_flat, y, w_t, b)
    try:
        # Single-buffer the constant-index W / bias blocks (no per-step re-DMA, less VMEM).
        return _make_call(B, tm, in_dim, vmem_limit, pl.Buffered(1))(*args)
    except Exception:
        # Fallback: default pipelining for W / bias (correctness identical).
        return _make_call(B, tm, in_dim, vmem_limit, None)(*args)


if __name__ == "__main__":
    key = jax.random.PRNGKey(0)
    k_x, k_y, k_w, k_b = jax.random.split(key, 4)

    B = 2
    input_dim = 32     # Linear input features
    output_dim = 784   # must equal 784 so x_flat * fc(y) is well defined

    # Deterministic synthetic parameters (PyTorch nn.Linear shape: (out, in); stored transposed)
    bound = 1.0 / jnp.sqrt(input_dim)
    w = jax.random.uniform(k_w, (output_dim, input_dim), jnp.float32, -bound, bound)
    b = jax.random.uniform(k_b, (1, output_dim), jnp.float32, -bound, bound)
    w_t = w.T  # (input_dim, output_dim)

    # --- small-shape check (B=2, single tile) ---
    x = jax.random.normal(k_x, (B, 1, 28, 28), jnp.float32)
    y = jax.random.normal(k_y, (B, input_dim), jnp.float32)

    out = multiply_forward(x, y, w_t, b)
    out = jax.block_until_ready(out)

    ref = x.reshape(B, 784) * (y @ w_t + b)
    assert out.shape == (B, 784)
    assert jnp.allclose(out, ref, atol=1e-5, rtol=1e-5)

    # --- tail-tile check: batch not a multiple of the tile size (exercises cdiv padding) ---
    B2 = 20
    k_x2, k_y2 = jax.random.split(jax.random.PRNGKey(1))
    x2 = jax.random.normal(k_x2, (B2, 1, 28, 28), jnp.float32)
    y2 = jax.random.normal(k_y2, (B2, input_dim), jnp.float32)

    out2 = multiply_forward(x2, y2, w_t, b, tm_max=8)  # grid = cdiv(20, 8) = 3, tail of 4 rows
    out2 = jax.block_until_ready(out2)

    ref2 = x2.reshape(B2, 784) * (y2 @ w_t + b)
    assert out2.shape == (B2, 784)
    assert jnp.allclose(out2, ref2, atol=1e-5, rtol=1e-5)

    # --- mid-size batch check: exercises the ">=2 grid steps" split for v7x dual-TC ---
    B3 = 300
    k_x3, k_y3 = jax.random.split(jax.random.PRNGKey(2))
    x3 = jax.random.normal(k_x3, (B3, 1, 28, 28), jnp.float32)
    y3 = jax.random.normal(k_y3, (B3, input_dim), jnp.float32)

    out3 = multiply_forward(x3, y3, w_t, b)  # tm = 152 -> grid = (2,), tail of 148 rows
    out3 = jax.block_until_ready(out3)

    ref3 = x3.reshape(B3, 784) * (y3 @ w_t + b)
    assert out3.shape == (B3, 784)
    assert jnp.allclose(out3, ref3, atol=1e-5, rtol=1e-5)

    print("KERNEL_OK")
</pallas_src>

<mosaic_0001>
module attributes {stable_mosaic.version = 11 : i64} {
  func.func @_multiply_kernel(%arg0: i32, %arg1: memref<2x784xf32, #tpu.memory_space<vmem>>, %arg2: memref<2x32xf32, #tpu.memory_space<vmem>>, %arg3: memref<32x784xf32, #tpu.memory_space<vmem>>, %arg4: memref<1x784xf32, #tpu.memory_space<vmem>>, %arg5: memref<2x784xf32, #tpu.memory_space<vmem>>) attributes {dimension_semantics = [#tpu.dimension_semantics<parallel>], iteration_bounds = array<i64: 1>, scalar_prefetch = 0 : i64, scratch_operands = 0 : i64, tpu.core_type = #tpu.core_type<tc>, window_params = [{transform_indices = @transform_0, window_bounds = array<i64: 2, 784>}, {transform_indices = @transform_1, window_bounds = array<i64: 2, 32>}, {pipeline_mode = #tpu.pipeline_mode<synchronous>, transform_indices = @transform_2, window_bounds = array<i64: 32, 784>}, {pipeline_mode = #tpu.pipeline_mode<synchronous>, transform_indices = @transform_3, window_bounds = array<i64: 1, 784>}, {transform_indices = @transform_4, window_bounds = array<i64: 2, 784>}]} {
    %c0 = arith.constant 0 : index
    %c0_0 = arith.constant 0 : index
    %0 = vector.load %arg2[%c0, %c0_0] : memref<2x32xf32, #tpu.memory_space<vmem>>, vector<2x32xf32>
    %c0_1 = arith.constant 0 : index
    %c0_2 = arith.constant 0 : index
    %1 = vector.load %arg3[%c0_1, %c0_2] : memref<32x784xf32, #tpu.memory_space<vmem>>, vector<32x784xf32>
    %cst = arith.constant dense<0.000000e+00> : vector<2x784xf32>
    %2 = tpu.matmul %0, %1, %cst {dimension_numbers = #tpu.dot_dimension_numbers<[1], [0], [0], [1], [0, 0, 1, 1], [], []>} : vector<2x32xf32>, vector<32x784xf32>, vector<2x784xf32> -> vector<2x784xf32>
    %c0_3 = arith.constant 0 : index
    %c0_4 = arith.constant 0 : index
    %3 = vector.load %arg4[%c0_3, %c0_4] : memref<1x784xf32, #tpu.memory_space<vmem>>, vector<1x784xf32>
    %4 = vector.broadcast %3 : vector<1x784xf32> to vector<2x784xf32>
    %5 = arith.addf %2, %4 : vector<2x784xf32>
    %c0_5 = arith.constant 0 : index
    %c0_6 = arith.constant 0 : index
    %6 = vector.load %arg1[%c0_5, %c0_6] : memref<2x784xf32, #tpu.memory_space<vmem>>, vector<2x784xf32>
    %7 = arith.mulf %6, %5 : vector<2x784xf32>
    %c0_7 = arith.constant 0 : index
    %c0_8 = arith.constant 0 : index
    %8 = vector.load %arg5[%c0_7, %c0_8] : memref<2x784xf32, #tpu.memory_space<vmem>>, vector<2x784xf32>
    tpu.vector_store %arg5[%c0_7, %c0_8], %7 {strides = array<i32>} : memref<2x784xf32, #tpu.memory_space<vmem>>, vector<2x784xf32>,
    return
  }
  func.func @transform_0(%arg0: i32) -> (i32, i32) {
    %c0_i32 = arith.constant 0 : i32
    %c0_i32_0 = arith.constant 0 : i32
    return %arg0, %c0_i32 : i32, i32
  }
  func.func @transform_1(%arg0: i32) -> (i32, i32) {
    %c0_i32 = arith.constant 0 : i32
    %c0_i32_0 = arith.constant 0 : i32
    return %arg0, %c0_i32 : i32, i32
  }
  func.func @transform_2(%arg0: i32) -> (i32, i32) {
    %c0_i32 = arith.constant 0 : i32
    %c0_i32_0 = arith.constant 0 : i32
    %c0_i32_1 = arith.constant 0 : i32
    return %c0_i32, %c0_i32_0 : i32, i32
  }
  func.func @transform_3(%arg0: i32) -> (i32, i32) {
    %c0_i32 = arith.constant 0 : i32
    %c0_i32_0 = arith.constant 0 : i32
    %c0_i32_1 = arith.constant 0 : i32
    return %c0_i32, %c0_i32_0 : i32, i32
  }
  func.func @transform_4(%arg0: i32) -> (i32, i32) {
    %c0_i32 = arith.constant 0 : i32
    %c0_i32_0 = arith.constant 0 : i32
    return %arg0, %c0_i32 : i32, i32
  }
}

module attributes {stable_mosaic.version = 11 : i64} {
  func.func @_multiply_kernel(%arg0: i32, %arg1: memref<2x784xf32, #tpu.memory_space<vmem>>, %arg2: memref<2x32xf32, #tpu.memory_space<vmem>>, %arg3: memref<32x784xf32, #tpu.memory_space<vmem>>, %arg4: memref<1x784xf32, #tpu.memory_space<vmem>>, %arg5: memref<2x784xf32, #tpu.memory_space<vmem>>) attributes {dimension_semantics = [#tpu.dimension_semantics<parallel>], iteration_bounds = array<i64: 1>, scalar_prefetch = 0 : i64, scratch_operands = 0 : i64, tpu.core_type = #tpu.core_type<tc>, window_params = [{transform_indices = @transform_0, window_bounds = array<i64: 2, 784>}, {transform_indices = @transform_1, window_bounds = array<i64: 2, 32>}, {pipeline_mode = #tpu.pipeline_mode<synchronous>, transform_indices = @transform_2, window_bounds = array<i64: 32, 784>}, {pipeline_mode = #tpu.pipeline_mode<synchronous>, transform_indices = @transform_3, window_bounds = array<i64: 1, 784>}, {transform_indices = @transform_4, window_bounds = array<i64: 2, 784>}]} {
    %c0 = arith.constant 0 : index
    %c0_0 = arith.constant 0 : index
    %0 = vector.load %arg2[%c0, %c0_0] : memref<2x32xf32, #tpu.memory_space<vmem>>, vector<2x32xf32>
    %c0_1 = arith.constant 0 : index
    %c0_2 = arith.constant 0 : index
    %1 = vector.load %arg3[%c0_1, %c0_2] : memref<32x784xf32, #tpu.memory_space<vmem>>, vector<32x784xf32>
    %cst = arith.constant dense<0.000000e+00> : vector<2x784xf32>
    %2 = tpu.matmul %0, %1, %cst {dimension_numbers = #tpu.dot_dimension_numbers<[1], [0], [0], [1], [0, 0, 1, 1], [], []>} : vector<2x32xf32>, vector<32x784xf32>, vector<2x784xf32> -> vector<2x784xf32>
    %c0_3 = arith.constant 0 : index
    %c0_4 = arith.constant 0 : index
    %3 = vector.load %arg4[%c0_3, %c0_4] : memref<1x784xf32, #tpu.memory_space<vmem>>, vector<1x784xf32>
    %4 = vector.broadcast %3 : vector<1x784xf32> to vector<2x784xf32>
    %5 = arith.addf %2, %4 : vector<2x784xf32>
    %c0_5 = arith.constant 0 : index
    %c0_6 = arith.constant 0 : index
    %6 = vector.load %arg1[%c0_5, %c0_6] : memref<2x784xf32, #tpu.memory_space<vmem>>, vector<2x784xf32>
    %7 = arith.mulf %6, %5 : vector<2x784xf32>
    %c0_7 = arith.constant 0 : index
    %c0_8 = arith.constant 0 : index
    %8 = vector.load %arg5[%c0_7, %c0_8] : memref<2x784xf32, #tpu.memory_space<vmem>>, vector<2x784xf32>
    tpu.vector_store %arg5[%c0_7, %c0_8], %7 {strides = array<i32>} : memref<2x784xf32, #tpu.memory_space<vmem>>, vector<2x784xf32>,
    return
  }
  func.func @transform_0(%arg0: i32) -> (i32, i32) {
    %c0_i32 = arith.constant 0 : i32
    %c0_i32_0 = arith.constant 0 : i32
    return %arg0, %c0_i32 : i32, i32
  }
  func.func @transform_1(%arg0: i32) -> (i32, i32) {
    %c0_i32 = arith.constant 0 : i32
    %c0_i32_0 = arith.constant 0 : i32
    return %arg0, %c0_i32 : i32, i32
  }
  func.func @transform_2(%arg0: i32) -> (i32, i32) {
    %c0_i32 = arith.constant 0 : i32
    %c0_i32_0 = arith.constant 0 : i32
    %c0_i32_1 = arith.constant 0 : i32
    return %c0_i32, %c0_i32_0 : i32, i32
  }
  func.func @transform_3(%arg0: i32) -> (i32, i32) {
    %c0_i32 = arith.constant 0 : i32
    %c0_i32_0 = arith.constant 0 : i32
    %c0_i32_1 = arith.constant 0 : i32
    return %c0_i32, %c0_i32_0 : i32, i32
  }
  func.func @transform_4(%arg0: i32) -> (i32, i32) {
    %c0_i32 = arith.constant 0 : i32
    %c0_i32_0 = arith.constant 0 : i32
    return %arg0, %c0_i32 : i32, i32
  }
}

</mosaic_0001>

<llo_original>
// kernel: tpu_custom_call.1
$region0: #{tpu_custom_call.1}
  #allocation0 [shape = 'u32[]', space=smem, size = 0x4, offset = 0x4, fixed_abs, tag = 'smem constant byte address 0x4 - core index']
  #allocation1 [shape = 'u32[72,128]{1,0:T(1,128)}', space=vmem, size = 0x9000, scoped, tag = 'internal scratch']
  %s0 = inlined_call_operand.hbm [shape: f32[2,784], index: 0, kind: input, shape index: {}]
  %s1 = inlined_call_operand.hbm [shape: f32[2,32], index: 1, kind: input, shape index: {}]
  %s2 = inlined_call_operand.hbm [shape: f32[32,784], index: 2, kind: input, shape index: {}]
  %s3 = inlined_call_operand.hbm [shape: f32[1,784], index: 3, kind: input, shape index: {}]
  %s4 = inlined_call_operand.hbm [shape: f32[2,784], index: 4, kind: output, shape index: {}]
  %s5 = sld [smem:[#allocation0]]
  $region42: #{tpu_custom_call.1} parent=0
    _
  %s7 = ssub.s32 1, %s5
  %s8 = scalar_select 0, %s7, %s5
  $region1: #{tpu_custom_call.1} parent=0
    #allocation2 [shape = 'u8[7168]{0}', space=vmem, size = 0x1c00, scoped, tag = 'input window, operand 0, single buffered']
    #allocation3 [shape = 's32[1]{0}', space=sflag, size = 0x4, scoped, tag = 'scoped memory for tpu_custom_call.1']
    #allocation4 [shape = 's32[1]{0}', space=sflag, size = 0x4, scoped, tag = 'scoped memory for tpu_custom_call.1']
    #allocation5 [shape = 'u8[1024]{0}', space=vmem, size = 0x400, scoped, tag = 'input window, operand 1, single buffered']
    #allocation6 [shape = 's32[1]{0}', space=sflag, size = 0x4, scoped, tag = 'scoped memory for tpu_custom_call.1']
    #allocation7 [shape = 'u8[114688]{0}', space=vmem, size = 0x1c000, scoped, tag = 'input window, operand 2, single buffered']
    #allocation8 [shape = 'u8[3584]{0}', space=vmem, size = 0x1000, scoped, tag = 'input window, operand 3, single buffered']
    #allocation9 [shape = 's32[1]{0}', space=sflag, size = 0x4, scoped, tag = 'scoped memory for tpu_custom_call.1']
    #allocation10 [shape = 'u8[7168]{0}', space=vmem, size = 0x1c00, scoped, tag = 'output window, operand 0, single buffered']
    %9 = vsyncpa [#allocation3], 0
    %10 = vsyncpa [#allocation6], 0
    %11 = vsyncpa [#allocation9], 0
    %12 = vsyncpa [#allocation4], 0
    // Predicated region
    $region2: #{tpu_custom_call.1} parent=1 // pred_check
      _
    $region3: #{tpu_custom_call.1} parent=1 // pred_check_branch
      %14 = sbr.rel (0) target = $region5
    $region4: #{tpu_custom_call.1} parent=1 // pred_region
      %16 = vsyncadd [#allocation3], 0
      %s18 = sshll.u32 %s0, 4
      %s19 = int_to_ptr.hbm [resolvable:$true] %s18
      %s20 = sshll.u32 [#allocation2], 4
      %s21 = int_to_ptr.vmem [resolvable:$true] %s20
      %23 = dma.hbm_to_vmem [thread:$0]  %s19, 224, %s21, [#allocation3]
    $region5: #{tpu_custom_call.1} parent=1 // pred_fallthru
      _
    // Predicated region
    $region6: #{tpu_custom_call.1} parent=1 // pred_check
      _
    $region7: #{tpu_custom_call.1} parent=1 // pred_check_branch
      %25 = sbr.rel (0) target = $region9
    $region8: #{tpu_custom_call.1} parent=1 // pred_region
      %27 = vsyncadd [#allocation6], 0
      %s29 = sshll.u32 %s1, 4
      %s30 = int_to_ptr.hbm [resolvable:$true] %s29
      %s31 = sshll.u32 [#allocation5], 4
      %s32 = int_to_ptr.vmem [resolvable:$true] %s31
      %34 = dma.hbm_to_vmem [thread:$0]  %s30, 32, %s32, [#allocation6]
    $region9: #{tpu_custom_call.1} parent=1 // pred_fallthru
      _
    // Predicated region
    $region10: #{tpu_custom_call.1} parent=1 // pred_check
      _
    $region11: #{tpu_custom_call.1} parent=1 // pred_check_branch
      %36 = sbr.rel (0) target = $region13
    $region12: #{tpu_custom_call.1} parent=1 // pred_region
      %38 = vsyncadd [#allocation6], 0
      %s39 = sshll.u32 %s2, 4
      %s40 = int_to_ptr.hbm [resolvable:$true] %s39
      %s41 = sshll.u32 [#allocation7], 4
      %s42 = int_to_ptr.vmem [resolvable:$true] %s41
      %47 = dma.hbm_to_vmem [thread:$0]  %s40, 3584, %s42, [#allocation6], 896, 896, 56
    $region13: #{tpu_custom_call.1} parent=1 // pred_fallthru
      _
    // Predicated region
    $region14: #{tpu_custom_call.1} parent=1 // pred_check
      _
    $region15: #{tpu_custom_call.1} parent=1 // pred_check_branch
      %49 = sbr.rel (0) target = $region17
    $region16: #{tpu_custom_call.1} parent=1 // pred_region
      %51 = vsyncadd [#allocation9], 0
      %s53 = sshll.u32 %s3, 4
      %s54 = int_to_ptr.hbm [resolvable:$true] %s53
      %s55 = sshll.u32 [#allocation8], 4
      %s56 = int_to_ptr.vmem [resolvable:$true] %s55
      %58 = dma.hbm_to_vmem [thread:$0]  %s54, 112, %s56, [#allocation9]
    $region17: #{tpu_custom_call.1} parent=1 // pred_fallthru
      _
    // Predicated region
    $region18: #{tpu_custom_call.1} parent=1 // pred_check
      _
    $region19: #{tpu_custom_call.1} parent=1 // pred_check_branch
      %60 = sbr.rel (0) target = $region21
    $region20: #{tpu_custom_call.1} parent=1 // pred_region
      %62 = dma.done [#allocation3], 224
    $region21: #{tpu_custom_call.1} parent=1 // pred_fallthru
      _
    // Predicated region
    $region22: #{tpu_custom_call.1} parent=1 // pred_check
      _
    $region23: #{tpu_custom_call.1} parent=1 // pred_check_branch
      %64 = sbr.rel (0) target = $region25
    $region24: #{tpu_custom_call.1} parent=1 // pred_region
      %66 = dma.done [#allocation6], 32
    $region25: #{tpu_custom_call.1} parent=1 // pred_fallthru
      _
    // Predicated region
    $region26: #{tpu_custom_call.1} parent=1 // pred_check
      _
    $region27: #{tpu_custom_call.1} parent=1 // pred_check_branch
      %68 = sbr.rel (0) target = $region29
    $region28: #{tpu_custom_call.1} parent=1 // pred_region
      %70 = dma.done [#allocation6], 3584
    $region29: #{tpu_custom_call.1} parent=1 // pred_fallthru
      _
    // Predicated region
    $region30: #{tpu_custom_call.1} parent=1 // pred_check
      _
    $region31: #{tpu_custom_call.1} parent=1 // pred_check_branch
      %72 = sbr.rel (0) target = $region33
    $region32: #{tpu_custom_call.1} parent=1 // pred_region
      %74 = dma.done [#allocation9], 112
    $region33: #{tpu_custom_call.1} parent=1 // pred_fallthru
      _
    %v75 = vld [vmem:[#allocation5] sm:$0x3]
    %v76 = vld [vmem:[#allocation7] sm:$0xff]
    %v77 = vld [vmem:[#allocation7 + $0x8] sm:$0xff]
    %v78 = vld [vmem:[#allocation7 + $0x10] sm:$0xff]
    %v79 = vld [vmem:[#allocation7 + $0x18] sm:$0xff]
    %v80 = vld [vmem:[#allocation7 + $0x20] sm:$0xff]
    %v81 = vld [vmem:[#allocation7 + $0x28] sm:$0xff]
    %v82 = vld [vmem:[#allocation7 + $0x30] sm:$0xff]
    %v83 = vld [vmem:[#allocation7 + $0x38] sm:$0xff]
    %v84 = vld [vmem:[#allocation7 + $0x40] sm:$0xff]
    %v85 = vld [vmem:[#allocation7 + $0x48] sm:$0xff]
    %v86 = vld [vmem:[#allocation7 + $0x50] sm:$0xff]
    %v87 = vld [vmem:[#allocation7 + $0x58] sm:$0xff]
    %v88 = vld [vmem:[#allocation7 + $0x60] sm:$0xff]
    %v89 = vld [vmem:[#allocation7 + $0x68] sm:$0xff]
    %v90 = vld [vmem:[#allocation7 + $0x70] sm:$0xff]
    %v91 = vld [vmem:[#allocation7 + $0x78] sm:$0xff]
    %v92 = vld [vmem:[#allocation7 + $0x80] sm:$0xff]
    %v93 = vld [vmem:[#allocation7 + $0x88] sm:$0xff]
    %v94 = vld [vmem:[#allocation7 + $0x90] sm:$0xff]
    %v95 = vld [vmem:[#allocation7 + $0x98] sm:$0xff]
    %v96 = vld [vmem:[#allocation7 + $0xa0] sm:$0xff]
    %v97 = vld [vmem:[#allocation7 + $0xa8] sm:$0xff]
    %v98 = vld [vmem:[#allocation7 + $0xb0] sm:$0xff]
    %v99 = vld [vmem:[#allocation7 + $0xb8] sm:$0xff]
    %v100 = vld [vmem:[#allocation7 + $0xc0] sm:$0xff]
    %v101 = vld [vmem:[#allocation7 + $0xc8] sm:$0xff]
    %v102 = vld [vmem:[#allocation7 + $0xd0] sm:$0xff]
    %v103 = vld [vmem:[#allocation7 + $0xd8] sm:$0xff]
    %v104 = vld [vmem:[#allocation8] sm:$0x7f]
    %v106 = vperm.slane %v104, 0
    %v107 = vperm.slane %v104, 1
    %v108 = vperm.slane %v104, 2
    %v109 = vperm.slane %v104, 3
    %v110 = vperm.slane %v104, 4
    %v111 = vperm.slane %v104, 5
    %v112 = vperm.slane %v104, 6
    %vm120 = vcmask 261120
    %v122 = vsel %vm120, %v75, 0
    %124 = vmatpush.msra.mxu0 0.0
    %125 = vmatpush.msra.mxu0 0.0
    %126 = vmatpush.msra.mxu0 0.0
    %127 = vmatpush.msra.mxu0 0.0
    %128 = vmatpush.msra.mxu0 0.0
    %129 = vmatpush.msra.mxu0 0.0
    %130 = vmatpush.msra.mxu0 0.0
    %131 = vmatpush.msra.mxu0 0.0
    %132 = vmatpush.msra.mxu0 0.0
    %133 = vmatpush.msra.mxu0 0.0
    %134 = vmatpush.msra.mxu0 0.0
    %135 = vmatpush.msra.mxu0 0.0
    %136 = vmatpush.msra.mxu0 %v97
    %137 = vmatpush.msra.mxu0 %v90
    %138 = vmatpush.msra.mxu0 %v83
    %139 = vmatpush.msra.mxu0 %v76
    %140 = vmatmul.f32.gmra.mxu0 %v122
    %v141 = vpop.f32.mrf.mxu0
    %v142 = vadd.f32 %v106, %v141
    %143 = vdwg.mxu0
    %144 = vmatpush.msra.mxu0 0.0
    %145 = vmatpush.msra.mxu0 0.0
    %146 = vmatpush.msra.mxu0 0.0
    %147 = vmatpush.msra.mxu0 0.0
    %148 = vmatpush.msra.mxu0 0.0
    %149 = vmatpush.msra.mxu0 0.0
    %150 = vmatpush.msra.mxu0 0.0
    %151 = vmatpush.msra.mxu0 0.0
    %152 = vmatpush.msra.mxu0 0.0
    %153 = vmatpush.msra.mxu0 0.0
    %154 = vmatpush.msra.mxu0 0.0
    %155 = vmatpush.msra.mxu0 0.0
    %156 = vmatpush.msra.mxu0 %v98
    %157 = vmatpush.msra.mxu0 %v91
    %158 = vmatpush.msra.mxu0 %v84
    %159 = vmatpush.msra.mxu0 %v77
    %160 = vmatmul.f32.gmra.mxu0 %v122
    %v161 = vpop.f32.mrf.mxu0
    %v162 = vadd.f32 %v107, %v161
    %163 = vdwg.mxu0
    %164 = vmatpush.msra.mxu0 0.0
    %165 = vmatpush.msra.mxu0 0.0
    %166 = vmatpush.msra.mxu0 0.0
    %167 = vmatpush.msra.mxu0 0.0
    %168 = vmatpush.msra.mxu0 0.0
    %169 = vmatpush.msra.mxu0 0.0
    %170 = vmatpush.msra.mxu0 0.0
    %171 = vmatpush.msra.mxu0 0.0
    %172 = vmatpush.msra.mxu0 0.0
    %173 = vmatpush.msra.mxu0 0.0
    %174 = vmatpush.msra.mxu0 0.0
    %175 = vmatpush.msra.mxu0 0.0
    %176 = vmatpush.msra.mxu0 %v99
    %177 = vmatpush.msra.mxu0 %v92
    %178 = vmatpush.msra.mxu0 %v85
    %179 = vmatpush.msra.mxu0 %v78
    %180 = vmatmul.f32.gmra.mxu0 %v122
    %v181 = vpop.f32.mrf.mxu0
    %v182 = vadd.f32 %v108, %v181
    %183 = vdwg.mxu0
    %184 = vmatpush.msra.mxu0 0.0
    %185 = vmatpush.msra.mxu0 0.0
    %186 = vmatpush.msra.mxu0 0.0
    %187 = vmatpush.msra.mxu0 0.0
    %188 = vmatpush.msra.mxu0 0.0
    %189 = vmatpush.msra.mxu0 0.0
    %190 = vmatpush.msra.mxu0 0.0
    %191 = vmatpush.msra.mxu0 0.0
    %192 = vmatpush.msra.mxu0 0.0
    %193 = vmatpush.msra.mxu0 0.0
    %194 = vmatpush.msra.mxu0 0.0
    %195 = vmatpush.msra.mxu0 0.0
    %196 = vmatpush.msra.mxu0 %v100
    %197 = vmatpush.msra.mxu0 %v93
    %198 = vmatpush.msra.mxu0 %v86
    %199 = vmatpush.msra.mxu0 %v79
    %200 = vmatmul.f32.gmra.mxu0 %v122
    %v201 = vpop.f32.mrf.mxu0
    %v202 = vadd.f32 %v109, %v201
    %203 = vdwg.mxu0
    %204 = vmatpush.msra.mxu0 0.0
    %205 = vmatpush.msra.mxu0 0.0
    %206 = vmatpush.msra.mxu0 0.0
    %207 = vmatpush.msra.mxu0 0.0
    %208 = vmatpush.msra.mxu0 0.0
    %209 = vmatpush.msra.mxu0 0.0
    %210 = vmatpush.msra.mxu0 0.0
    %211 = vmatpush.msra.mxu0 0.0
    %212 = vmatpush.msra.mxu0 0.0
    %213 = vmatpush.msra.mxu0 0.0
    %214 = vmatpush.msra.mxu0 0.0
    %215 = vmatpush.msra.mxu0 0.0
    %216 = vmatpush.msra.mxu0 %v101
    %217 = vmatpush.msra.mxu0 %v94
    %218 = vmatpush.msra.mxu0 %v87
    %219 = vmatpush.msra.mxu0 %v80
    %220 = vmatmul.f32.gmra.mxu0 %v122
    %v221 = vpop.f32.mrf.mxu0
    %v222 = vadd.f32 %v110, %v221
    %223 = vdwg.mxu0
    %224 = vmatpush.msra.mxu0 0.0
    %225 = vmatpush.msra.mxu0 0.0
    %226 = vmatpush.msra.mxu0 0.0
    %227 = vmatpush.msra.mxu0 0.0
    %228 = vmatpush.msra.mxu0 0.0
    %229 = vmatpush.msra.mxu0 0.0
    %230 = vmatpush.msra.mxu0 0.0
    %231 = vmatpush.msra.mxu0 0.0
    %232 = vmatpush.msra.mxu0 0.0
    %233 = vmatpush.msra.mxu0 0.0
    %234 = vmatpush.msra.mxu0 0.0
    %235 = vmatpush.msra.mxu0 0.0
    %236 = vmatpush.msra.mxu0 %v102
    %237 = vmatpush.msra.mxu0 %v95
    %238 = vmatpush.msra.mxu0 %v88
    %239 = vmatpush.msra.mxu0 %v81
    %240 = vmatmul.f32.gmra.mxu0 %v122
    %v241 = vpop.f32.mrf.mxu0
    %v242 = vadd.f32 %v111, %v241
    %243 = vdwg.mxu0
    %244 = vmatpush.msra.mxu0 0.0
    %245 = vmatpush.msra.mxu0 0.0
    %246 = vmatpush.msra.mxu0 0.0
    %247 = vmatpush.msra.mxu0 0.0
    %248 = vmatpush.msra.mxu0 0.0
    %249 = vmatpush.msra.mxu0 0.0
    %250 = vmatpush.msra.mxu0 0.0
    %251 = vmatpush.msra.mxu0 0.0
    %252 = vmatpush.msra.mxu0 0.0
    %253 = vmatpush.msra.mxu0 0.0
    %254 = vmatpush.msra.mxu0 0.0
    %255 = vmatpush.msra.mxu0 0.0
    %256 = vmatpush.msra.mxu0 %v103
    %257 = vmatpush.msra.mxu0 %v96
    %258 = vmatpush.msra.mxu0 %v89
    %259 = vmatpush.msra.mxu0 %v82
    %260 = vmatmul.f32.gmra.mxu0 %v122
    %v261 = vpop.f32.mrf.mxu0
    %v262 = vadd.f32 %v112, %v261
    %263 = vdwg.mxu0
    %v264 = vld [vmem:[#allocation2] sm:$0xff]
    %v265 = vld [vmem:[#allocation2 + $0x8] sm:$0x3f]
    %v273 = vrot.slane %v162, 6
    %v274 = vrot.slane %v182, 4
    %v275 = vrot.slane %v202, 2
    %v276 = vrot.slane %v242, 6
    %v277 = vrot.slane %v262, 4
    %vm278 = vcmask 1041408
    %v279 = vsel %vm278, %v142, %v273
    %vm280 = vcmask 1045508
    %v281 = vsel %vm280, %v274, %v275
    %vm282 = vcmask 1043456
    %v283 = vsel %vm282, %v279, %v281
    %v284 = vsel %vm278, %v222, %v276
    %v285 = vsel %vm282, %v284, %v277
    %v288 = vmul.f32 %v264, %v283
    %v289 = vmul.f32 %v265, %v285
    %290 = vst [vmem:[#allocation10] sm:$0xff] %v288
    %vm291 = vcmask 1043458
    %vm292 = vmor %vm291, %vm278
    %vm293 = vcmask 128004
    %vm294 = vmor %vm293, %vm292
    %295 = vst.msk [vmem:[#allocation10 + $0x8] sm:$0x3f] %vm294, %v289
    // Predicated region
    $region34: #{tpu_custom_call.1} parent=1 // pred_check
      _
    $region35: #{tpu_custom_call.1} parent=1 // pred_check_branch
      %297 = sbr.rel (0) target = $region37
    $region36: #{tpu_custom_call.1} parent=1 // pred_region
      %299 = vsyncadd [#allocation4], 0
      %s301 = sshll.u32 [#allocation10], 4
      %s302 = int_to_ptr.vmem [resolvable:$true] %s301
      %s303 = sshll.u32 %s4, 4
      %s304 = int_to_ptr.hbm [resolvable:$true] %s303
      %306 = dma.vmem_to_hbm [thread:$0]  %s302, 224, %s304, [#allocation4]
    $region37: #{tpu_custom_call.1} parent=1 // pred_fallthru
      _
    // Predicated region
    $region38: #{tpu_custom_call.1} parent=1 // pred_check
      _
    $region39: #{tpu_custom_call.1} parent=1 // pred_check_branch
      %308 = sbr.rel (0) target = $region41
    $region40: #{tpu_custom_call.1} parent=1 // pred_region
      %310 = dma.done [#allocation4], 224
    $region41: #{tpu_custom_call.1} parent=1 // pred_fallthru
      _
    %311 = vsyncpa [#allocation3], 1
    %312 = vsyncpa [#allocation6], 1
    %313 = vsyncpa [#allocation9], 1
    %314 = vsyncpa [#allocation4], 1

// kernel: tpu_custom_call.1
$region0: #{tpu_custom_call.1}
  #allocation0 [shape = 'u32[]', space=smem, size = 0x4, offset = 0x4, fixed_abs, tag = 'smem constant byte address 0x4 - core index']
  #allocation1 [shape = 'u32[72,128]{1,0:T(1,128)}', space=vmem, size = 0x9000, scoped, tag = 'internal scratch']
  %s0 = inlined_call_operand.hbm [shape: f32[2,784], index: 0, kind: input, shape index: {}]
  %s1 = inlined_call_operand.hbm [shape: f32[2,32], index: 1, kind: input, shape index: {}]
  %s2 = inlined_call_operand.hbm [shape: f32[32,784], index: 2, kind: input, shape index: {}]
  %s3 = inlined_call_operand.hbm [shape: f32[1,784], index: 3, kind: input, shape index: {}]
  %s4 = inlined_call_operand.hbm [shape: f32[2,784], index: 4, kind: output, shape index: {}]
  %s5 = sld [smem:[#allocation0]]
  $region42: #{tpu_custom_call.1} parent=0
    _
  %s7 = ssub.s32 1, %s5
  %s8 = scalar_select 0, %s7, %s5
  $region1: #{tpu_custom_call.1} parent=0
    #allocation2 [shape = 'u8[7168]{0}', space=vmem, size = 0x1c00, scoped, tag = 'input window, operand 0, single buffered']
    #allocation3 [shape = 's32[1]{0}', space=sflag, size = 0x4, scoped, tag = 'scoped memory for tpu_custom_call.1']
    #allocation4 [shape = 's32[1]{0}', space=sflag, size = 0x4, scoped, tag = 'scoped memory for tpu_custom_call.1']
    #allocation5 [shape = 'u8[1024]{0}', space=vmem, size = 0x400, scoped, tag = 'input window, operand 1, single buffered']
    #allocation6 [shape = 's32[1]{0}', space=sflag, size = 0x4, scoped, tag = 'scoped memory for tpu_custom_call.1']
    #allocation7 [shape = 'u8[114688]{0}', space=vmem, size = 0x1c000, scoped, tag = 'input window, operand 2, single buffered']
    #allocation8 [shape = 'u8[3584]{0}', space=vmem, size = 0x1000, scoped, tag = 'input window, operand 3, single buffered']
    #allocation9 [shape = 's32[1]{0}', space=sflag, size = 0x4, scoped, tag = 'scoped memory for tpu_custom_call.1']
    #allocation10 [shape = 'u8[7168]{0}', space=vmem, size = 0x1c00, scoped, tag = 'output window, operand 0, single buffered']
    %9 = vsyncpa [#allocation3], 0
    %10 = vsyncpa [#allocation6], 0
    %11 = vsyncpa [#allocation9], 0
    %12 = vsyncpa [#allocation4], 0
    // Predicated region
    $region2: #{tpu_custom_call.1} parent=1 // pred_check
      _
    $region3: #{tpu_custom_call.1} parent=1 // pred_check_branch
      %14 = sbr.rel (0) target = $region5
    $region4: #{tpu_custom_call.1} parent=1 // pred_region
      %16 = vsyncadd [#allocation3], 0
      %s18 = sshll.u32 %s0, 4
      %s19 = int_to_ptr.hbm [resolvable:$true] %s18
      %s20 = sshll.u32 [#allocation2], 4
      %s21 = int_to_ptr.vmem [resolvable:$true] %s20
      %23 = dma.hbm_to_vmem [thread:$0]  %s19, 224, %s21, [#allocation3]
    $region5: #{tpu_custom_call.1} parent=1 // pred_fallthru
      _
    // Predicated region
    $region6: #{tpu_custom_call.1} parent=1 // pred_check
      _
    $region7: #{tpu_custom_call.1} parent=1 // pred_check_branch
      %25 = sbr.rel (0) target = $region9
    $region8: #{tpu_custom_call.1} parent=1 // pred_region
      %27 = vsyncadd [#allocation6], 0
      %s29 = sshll.u32 %s1, 4
      %s30 = int_to_ptr.hbm [resolvable:$true] %s29
      %s31 = sshll.u32 [#allocation5], 4
      %s32 = int_to_ptr.vmem [resolvable:$true] %s31
      %34 = dma.hbm_to_vmem [thread:$0]  %s30, 32, %s32, [#allocation6]
    $region9: #{tpu_custom_call.1} parent=1 // pred_fallthru
      _
    // Predicated region
    $region10: #{tpu_custom_call.1} parent=1 // pred_check
      _
    $region11: #{tpu_custom_call.1} parent=1 // pred_check_branch
      %36 = sbr.rel (0) target = $region13
    $region12: #{tpu_custom_call.1} parent=1 // pred_region
      %38 = vsyncadd [#allocation6], 0
      %s39 = sshll.u32 %s2, 4
      %s40 = int_to_ptr.hbm [resolvable:$true] %s39
      %s41 = sshll.u32 [#allocation7], 4
      %s42 = int_to_ptr.vmem [resolvable:$true] %s41
      %47 = dma.hbm_to_vmem [thread:$0]  %s40, 3584, %s42, [#allocation6], 896, 896, 56
    $region13: #{tpu_custom_call.1} parent=1 // pred_fallthru
      _
    // Predicated region
    $region14: #{tpu_custom_call.1} parent=1 // pred_check
      _
    $region15: #{tpu_custom_call.1} parent=1 // pred_check_branch
      %49 = sbr.rel (0) target = $region17
    $region16: #{tpu_custom_call.1} parent=1 // pred_region
      %51 = vsyncadd [#allocation9], 0
      %s53 = sshll.u32 %s3, 4
      %s54 = int_to_ptr.hbm [resolvable:$true] %s53
      %s55 = sshll.u32 [#allocation8], 4
      %s56 = int_to_ptr.vmem [resolvable:$true] %s55
      %58 = dma.hbm_to_vmem [thread:$0]  %s54, 112, %s56, [#allocation9]
    $region17: #{tpu_custom_call.1} parent=1 // pred_fallthru
      _
    // Predicated region
    $region18: #{tpu_custom_call.1} parent=1 // pred_check
      _
    $region19: #{tpu_custom_call.1} parent=1 // pred_check_branch
      %60 = sbr.rel (0) target = $region21
    $region20: #{tpu_custom_call.1} parent=1 // pred_region
      %62 = dma.done [#allocation3], 224
    $region21: #{tpu_custom_call.1} parent=1 // pred_fallthru
      _
    // Predicated region
    $region22: #{tpu_custom_call.1} parent=1 // pred_check
      _
    $region23: #{tpu_custom_call.1} parent=1 // pred_check_branch
      %64 = sbr.rel (0) target = $region25
    $region24: #{tpu_custom_call.1} parent=1 // pred_region
      %66 = dma.done [#allocation6], 32
    $region25: #{tpu_custom_call.1} parent=1 // pred_fallthru
      _
    // Predicated region
    $region26: #{tpu_custom_call.1} parent=1 // pred_check
      _
    $region27: #{tpu_custom_call.1} parent=1 // pred_check_branch
      %68 = sbr.rel (0) target = $region29
    $region28: #{tpu_custom_call.1} parent=1 // pred_region
      %70 = dma.done [#allocation6], 3584
    $region29: #{tpu_custom_call.1} parent=1 // pred_fallthru
      _
    // Predicated region
    $region30: #{tpu_custom_call.1} parent=1 // pred_check
      _
    $region31: #{tpu_custom_call.1} parent=1 // pred_check_branch
      %72 = sbr.rel (0) target = $region33
    $region32: #{tpu_custom_call.1} parent=1 // pred_region
      %74 = dma.done [#allocation9], 112
    $region33: #{tpu_custom_call.1} parent=1 // pred_fallthru
      _
    %v75 = vld [vmem:[#allocation5] sm:$0x3]
    %v76 = vld [vmem:[#allocation7] sm:$0xff]
    %v77 = vld [vmem:[#allocation7 + $0x8] sm:$0xff]
    %v78 = vld [vmem:[#allocation7 + $0x10] sm:$0xff]
    %v79 = vld [vmem:[#allocation7 + $0x18] sm:$0xff]
    %v80 = vld [vmem:[#allocation7 + $0x20] sm:$0xff]
    %v81 = vld [vmem:[#allocation7 + $0x28] sm:$0xff]
    %v82 = vld [vmem:[#allocation7 + $0x30] sm:$0xff]
    %v83 = vld [vmem:[#allocation7 + $0x38] sm:$0xff]
    %v84 = vld [vmem:[#allocation7 + $0x40] sm:$0xff]
    %v85 = vld [vmem:[#allocation7 + $0x48] sm:$0xff]
    %v86 = vld [vmem:[#allocation7 + $0x50] sm:$0xff]
    %v87 = vld [vmem:[#allocation7 + $0x58] sm:$0xff]
    %v88 = vld [vmem:[#allocation7 + $0x60] sm:$0xff]
    %v89 = vld [vmem:[#allocation7 + $0x68] sm:$0xff]
    %v90 = vld [vmem:[#allocation7 + $0x70] sm:$0xff]
    %v91 = vld [vmem:[#allocation7 + $0x78] sm:$0xff]
    %v92 = vld [vmem:[#allocation7 + $0x80] sm:$0xff]
    %v93 = vld [vmem:[#allocation7 + $0x88] sm:$0xff]
    %v94 = vld [vmem:[#allocation7 + $0x90] sm:$0xff]
    %v95 = vld [vmem:[#allocation7 + $0x98] sm:$0xff]
    %v96 = vld [vmem:[#allocation7 + $0xa0] sm:$0xff]
    %v97 = vld [vmem:[#allocation7 + $0xa8] sm:$0xff]
    %v98 = vld [vmem:[#allocation7 + $0xb0] sm:$0xff]
    %v99 = vld [vmem:[#allocation7 + $0xb8] sm:$0xff]
    %v100 = vld [vmem:[#allocation7 + $0xc0] sm:$0xff]
    %v101 = vld [vmem:[#allocation7 + $0xc8] sm:$0xff]
    %v102 = vld [vmem:[#allocation7 + $0xd0] sm:$0xff]
    %v103 = vld [vmem:[#allocation7 + $0xd8] sm:$0xff]
    %v104 = vld [vmem:[#allocation8] sm:$0x7f]
    %v106 = vperm.slane %v104, 0
    %v107 = vperm.slane %v104, 1
    %v108 = vperm.slane %v104, 2
    %v109 = vperm.slane %v104, 3
    %v110 = vperm.slane %v104, 4
    %v111 = vperm.slane %v104, 5
    %v112 = vperm.slane %v104, 6
    %vm120 = vcmask 261120
    %v122 = vsel %vm120, %v75, 0
    %124 = vmatpush.msra.mxu0 0.0
    %125 = vmatpush.msra.mxu0 0.0
    %126 = vmatpush.msra.mxu0 0.0
    %127 = vmatpush.msra.mxu0 0.0
    %128 = vmatpush.msra.mxu0 0.0
    %129 = vmatpush.msra.mxu0 0.0
    %130 = vmatpush.msra.mxu0 0.0
    %131 = vmatpush.msra.mxu0 0.0
    %132 = vmatpush.msra.mxu0 0.0
    %133 = vmatpush.msra.mxu0 0.0
    %134 = vmatpush.msra.mxu0 0.0
    %135 = vmatpush.msra.mxu0 0.0
    %136 = vmatpush.msra.mxu0 %v97
    %137 = vmatpush.msra.mxu0 %v90
    %138 = vmatpush.msra.mxu0 %v83
    %139 = vmatpush.msra.mxu0 %v76
    %140 = vmatmul.f32.gmra.mxu0 %v122
    %v141 = vpop.f32.mrf.mxu0
    %v142 = vadd.f32 %v106, %v141
    %143 = vdwg.mxu0
    %144 = vmatpush.msra.mxu0 0.0
    %145 = vmatpush.msra.mxu0 0.0
    %146 = vmatpush.msra.mxu0 0.0
    %147 = vmatpush.msra.mxu0 0.0
    %148 = vmatpush.msra.mxu0 0.0
    %149 = vmatpush.msra.mxu0 0.0
    %150 = vmatpush.msra.mxu0 0.0
    %151 = vmatpush.msra.mxu0 0.0
    %152 = vmatpush.msra.mxu0 0.0
    %153 = vmatpush.msra.mxu0 0.0
    %154 = vmatpush.msra.mxu0 0.0
    %155 = vmatpush.msra.mxu0 0.0
    %156 = vmatpush.msra.mxu0 %v98
    %157 = vmatpush.msra.mxu0 %v91
    %158 = vmatpush.msra.mxu0 %v84
    %159 = vmatpush.msra.mxu0 %v77
    %160 = vmatmul.f32.gmra.mxu0 %v122
    %v161 = vpop.f32.mrf.mxu0
    %v162 = vadd.f32 %v107, %v161
    %163 = vdwg.mxu0
    %164 = vmatpush.msra.mxu0 0.0
    %165 = vmatpush.msra.mxu0 0.0
    %166 = vmatpush.msra.mxu0 0.0
    %167 = vmatpush.msra.mxu0 0.0
    %168 = vmatpush.msra.mxu0 0.0
    %169 = vmatpush.msra.mxu0 0.0
    %170 = vmatpush.msra.mxu0 0.0
    %171 = vmatpush.msra.mxu0 0.0
    %172 = vmatpush.msra.mxu0 0.0
    %173 = vmatpush.msra.mxu0 0.0
    %174 = vmatpush.msra.mxu0 0.0
    %175 = vmatpush.msra.mxu0 0.0
    %176 = vmatpush.msra.mxu0 %v99
    %177 = vmatpush.msra.mxu0 %v92
    %178 = vmatpush.msra.mxu0 %v85
    %179 = vmatpush.msra.mxu0 %v78
    %180 = vmatmul.f32.gmra.mxu0 %v122
    %v181 = vpop.f32.mrf.mxu0
    %v182 = vadd.f32 %v108, %v181
    %183 = vdwg.mxu0
    %184 = vmatpush.msra.mxu0 0.0
    %185 = vmatpush.msra.mxu0 0.0
    %186 = vmatpush.msra.mxu0 0.0
    %187 = vmatpush.msra.mxu0 0.0
    %188 = vmatpush.msra.mxu0 0.0
    %189 = vmatpush.msra.mxu0 0.0
    %190 = vmatpush.msra.mxu0 0.0
    %191 = vmatpush.msra.mxu0 0.0
    %192 = vmatpush.msra.mxu0 0.0
    %193 = vmatpush.msra.mxu0 0.0
    %194 = vmatpush.msra.mxu0 0.0
    %195 = vmatpush.msra.mxu0 0.0
    %196 = vmatpush.msra.mxu0 %v100
    %197 = vmatpush.msra.mxu0 %v93
    %198 = vmatpush.msra.mxu0 %v86
    %199 = vmatpush.msra.mxu0 %v79
    %200 = vmatmul.f32.gmra.mxu0 %v122
    %v201 = vpop.f32.mrf.mxu0
    %v202 = vadd.f32 %v109, %v201
    %203 = vdwg.mxu0
    %204 = vmatpush.msra.mxu0 0.0
    %205 = vmatpush.msra.mxu0 0.0
    %206 = vmatpush.msra.mxu0 0.0
    %207 = vmatpush.msra.mxu0 0.0
    %208 = vmatpush.msra.mxu0 0.0
    %209 = vmatpush.msra.mxu0 0.0
    %210 = vmatpush.msra.mxu0 0.0
    %211 = vmatpush.msra.mxu0 0.0
    %212 = vmatpush.msra.mxu0 0.0
    %213 = vmatpush.msra.mxu0 0.0
    %214 = vmatpush.msra.mxu0 0.0
    %215 = vmatpush.msra.mxu0 0.0
    %216 = vmatpush.msra.mxu0 %v101
    %217 = vmatpush.msra.mxu0 %v94
    %218 = vmatpush.msra.mxu0 %v87
    %219 = vmatpush.msra.mxu0 %v80
    %220 = vmatmul.f32.gmra.mxu0 %v122
    %v221 = vpop.f32.mrf.mxu0
    %v222 = vadd.f32 %v110, %v221
    %223 = vdwg.mxu0
    %224 = vmatpush.msra.mxu0 0.0
    %225 = vmatpush.msra.mxu0 0.0
    %226 = vmatpush.msra.mxu0 0.0
    %227 = vmatpush.msra.mxu0 0.0
    %228 = vmatpush.msra.mxu0 0.0
    %229 = vmatpush.msra.mxu0 0.0
    %230 = vmatpush.msra.mxu0 0.0
    %231 = vmatpush.msra.mxu0 0.0
    %232 = vmatpush.msra.mxu0 0.0
    %233 = vmatpush.msra.mxu0 0.0
    %234 = vmatpush.msra.mxu0 0.0
    %235 = vmatpush.msra.mxu0 0.0
    %236 = vmatpush.msra.mxu0 %v102
    %237 = vmatpush.msra.mxu0 %v95
    %238 = vmatpush.msra.mxu0 %v88
    %239 = vmatpush.msra.mxu0 %v81
    %240 = vmatmul.f32.gmra.mxu0 %v122
    %v241 = vpop.f32.mrf.mxu0
    %v242 = vadd.f32 %v111, %v241
    %243 = vdwg.mxu0
    %244 = vmatpush.msra.mxu0 0.0
    %245 = vmatpush.msra.mxu0 0.0
    %246 = vmatpush.msra.mxu0 0.0
    %247 = vmatpush.msra.mxu0 0.0
    %248 = vmatpush.msra.mxu0 0.0
    %249 = vmatpush.msra.mxu0 0.0
    %250 = vmatpush.msra.mxu0 0.0
    %251 = vmatpush.msra.mxu0 0.0
    %252 = vmatpush.msra.mxu0 0.0
    %253 = vmatpush.msra.mxu0 0.0
    %254 = vmatpush.msra.mxu0 0.0
    %255 = vmatpush.msra.mxu0 0.0
    %256 = vmatpush.msra.mxu0 %v103
    %257 = vmatpush.msra.mxu0 %v96
    %258 = vmatpush.msra.mxu0 %v89
    %259 = vmatpush.msra.mxu0 %v82
    %260 = vmatmul.f32.gmra.mxu0 %v122
    %v261 = vpop.f32.mrf.mxu0
    %v262 = vadd.f32 %v112, %v261
    %263 = vdwg.mxu0
    %v264 = vld [vmem:[#allocation2] sm:$0xff]
    %v265 = vld [vmem:[#allocation2 + $0x8] sm:$0x3f]
    %v273 = vrot.slane %v162, 6
    %v274 = vrot.slane %v182, 4
    %v275 = vrot.slane %v202, 2
    %v276 = vrot.slane %v242, 6
    %v277 = vrot.slane %v262, 4
    %vm278 = vcmask 1041408
    %v279 = vsel %vm278, %v142, %v273
    %vm280 = vcmask 1045508
    %v281 = vsel %vm280, %v274, %v275
    %vm282 = vcmask 1043456
    %v283 = vsel %vm282, %v279, %v281
    %v284 = vsel %vm278, %v222, %v276
    %v285 = vsel %vm282, %v284, %v277
    %v288 = vmul.f32 %v264, %v283
    %v289 = vmul.f32 %v265, %v285
    %290 = vst [vmem:[#allocation10] sm:$0xff] %v288
    %vm291 = vcmask 1043458
    %vm292 = vmor %vm291, %vm278
    %vm293 = vcmask 128004
    %vm294 = vmor %vm293, %vm292
    %295 = vst.msk [vmem:[#allocation10 + $0x8] sm:$0x3f] %vm294, %v289
    // Predicated region
    $region34: #{tpu_custom_call.1} parent=1 // pred_check
      _
    $region35: #{tpu_custom_call.1} parent=1 // pred_check_branch
      %297 = sbr.rel (0) target = $region37
    $region36: #{tpu_custom_call.1} parent=1 // pred_region
      %299 = vsyncadd [#allocation4], 0
      %s301 = sshll.u32 [#allocation10], 4
      %s302 = int_to_ptr.vmem [resolvable:$true] %s301
      %s303 = sshll.u32 %s4, 4
      %s304 = int_to_ptr.hbm [resolvable:$true] %s303
      %306 = dma.vmem_to_hbm [thread:$0]  %s302, 224, %s304, [#allocation4]
    $region37: #{tpu_custom_call.1} parent=1 // pred_fallthru
      _
    // Predicated region
    $region38: #{tpu_custom_call.1} parent=1 // pred_check
      _
    $region39: #{tpu_custom_call.1} parent=1 // pred_check_branch
      %308 = sbr.rel (0) target = $region41
    $region40: #{tpu_custom_call.1} parent=1 // pred_region
      %310 = dma.done [#allocation4], 224
    $region41: #{tpu_custom_call.1} parent=1 // pred_fallthru
      _
    %311 = vsyncpa [#allocation3], 1
    %312 = vsyncpa [#allocation6], 1
    %313 = vsyncpa [#allocation9], 1
    %314 = vsyncpa [#allocation4], 1

</llo_original>
